<compile_context>
chip_gen: v5e
topology: v5e:2x2
jax: 0.10.0
libtpu: 0.0.40
codegen_flags: <defaults>
</compile_context>

<pallas_src>
import numpy as np

import jax
import jax.numpy as jnp
from jax.experimental import pallas as pl
from jax.experimental.pallas import tpu as pltpu


# ---------------------------------------------------------------------------
# Kernel
# ---------------------------------------------------------------------------
def _adaptive_avg_pool_kernel(m_ref, scale_ref, x_ref, o_ref):
    """One grid step = `rows` (batch*channel) rows of the flattened NCHW input.

    m_ref:     (H*W, R)   bf16 0/1 indicator matrix, resident across the grid
    scale_ref: (1, R)     f32 per-output-window 1/count
    x_ref:     (rows, H*W) input rows, H*W on the lane axis (native dtype)
    o_ref:     (rows, R)  pooled outputs
    """
    x = x_ref[...]
    m = m_ref[...]                                   # exact 0/1 in bf16

    if x.dtype == jnp.float32:
        # Two single-pass bf16 MXU matmuls instead of Precision.HIGHEST (6 passes).
        # With an exact indicator matrix, (x_hi + x_lo) carries ~17 mantissa bits,
        # so the window sums match f32 to ~1e-5 relative.
        x_hi = x.astype(jnp.bfloat16)
        x_lo = (x - x_hi.astype(jnp.float32)).astype(jnp.bfloat16)
        acc = jnp.dot(x_hi, m, preferred_element_type=jnp.float32)
        acc = acc + jnp.dot(x_lo, m, preferred_element_type=jnp.float32)
    else:
        # bf16 (real-net) path: single MXU pass, f32 accumulation.
        acc = jnp.dot(x, m.astype(x.dtype), preferred_element_type=jnp.float32)

    # Averaging scale stays in f32 on the VPU (1/count is not exact in bf16).
    o_ref[...] = (acc * scale_ref[...]).astype(o_ref.dtype)


# ---------------------------------------------------------------------------
# Host-side helpers
# ---------------------------------------------------------------------------
def _adaptive_pool_plan(H, W, oh, ow):
    """0/1 indicator matrix (H*W, oh*ow) + per-output 1/count scale (1, oh*ow).

    Uses PyTorch's adaptive window rule:
        h0 = floor(i*H/oh), h1 = ceil((i+1)*H/oh)   (same for W).
    """
    R = oh * ow
    ind = np.zeros((H * W, R), dtype=np.float32)
    scale = np.zeros((1, R), dtype=np.float32)
    for i in range(oh):
        h0, h1 = (i * H) // oh, -(-((i + 1) * H) // oh)
        for j in range(ow):
            w0, w1 = (j * W) // ow, -(-((j + 1) * W) // ow)
            r = i * ow + j
            scale[0, r] = 1.0 / float((h1 - h0) * (w1 - w0))
            for h in range(h0, h1):
                ind[h * W + w0:h * W + w1, r] = 1.0
    return ind, scale


def _pick_rows_per_block(nc, hw, in_itemsize, r, *, budget_bytes=16 << 20):
    """Largest row-block that satisfies the (8, full) tiling rule and the VMEM budget.

    Counts: 2x double-buffered input block, in-kernel bf16 hi/lo temporaries
    (~= one more input block at f32), and 2x output block.  Prefers a choice
    that yields >= 2 grid steps so the 'parallel' axis can shard across both
    TensorCores on v7x.
    """
    def fits(rows):
        in_block = rows * hw * in_itemsize
        out_block = rows * r * max(in_itemsize, 4)
        return 5.0 * in_block + 2 * out_block <= budget_bytes

    cands = [d for d in range(8, nc + 1, 8) if nc % d == 0]
    if nc not in cands:
        cands.append(nc)          # full extent is always legal for the sublane dim
    cands.sort()

    fitting = [d for d in cands if fits(d)]
    if not fitting:
        # TODO(synk): add an H*W reduction-tiling fallback (accumulator scratch +
        # pl.when init/finalize) for feature maps too large for a single row block.
        return cands[0]
    multi = [d for d in fitting if nc // d >= 2]
    return max(multi) if multi else max(fitting)


def adaptive_avg_pool2d(x_nchw, output_size):
    """Matches nn.AdaptiveAvgPool2d(output_size=(s, s)) on NCHW input."""
    N, C, H, W = x_nchw.shape
    oh = ow = int(output_size)
    R = oh * ow
    HW = H * W
    NC = N * C

    ind_np, scale_np = _adaptive_pool_plan(H, W, oh, ow)
    m = jnp.asarray(ind_np, dtype=jnp.bfloat16)        # (HW, R) exact 0/1
    scale = jnp.asarray(scale_np, dtype=jnp.float32)   # (1, R)

    # NCHW -> (N*C, H*W): free reshape (H, W already contiguous); no transpose.
    x = x_nchw.reshape(NC, HW)

    rows = _pick_rows_per_block(NC, HW, x.dtype.itemsize, R)
    grid = (NC // rows,)

    passes = 2 if x.dtype == jnp.float32 else 1
    cost = pl.CostEstimate(
        flops=2 * passes * NC * HW * R,
        transcendentals=0,
        bytes_accessed=(NC * HW * x.dtype.itemsize          # input
                        + NC * R * x.dtype.itemsize          # output
                        + HW * R * 2 + R * 4),                # indicator + scale
    )

    out = pl.pallas_call(
        _adaptive_avg_pool_kernel,
        out_shape=jax.ShapeDtypeStruct((NC, R), x_nchw.dtype),
        grid_spec=pltpu.PrefetchScalarGridSpec(
            num_scalar_prefetch=0,
            grid=grid,
            in_specs=[
                # Indicator matrix / scale: constant block index -> fetched once,
                # resident across all grid steps.
                pl.BlockSpec((HW, R), lambda i: (0, 0)),
                pl.BlockSpec((1, R), lambda i: (0, 0)),
                # Input rows: lane-dense along H*W (full extent), sublane dim is a
                # multiple of 8 (or the full N*C extent).
                pl.BlockSpec((rows, HW), lambda i: (i, 0)),
            ],
            out_specs=pl.BlockSpec((rows, R), lambda i: (i, 0)),
        ),
        compiler_params=pltpu.CompilerParams(
            dimension_semantics=("parallel",),
            vmem_limit_bytes=48 << 20,   # above default scoped limits, v7x-safe
        ),
        cost_estimate=cost,
    )(m, scale, x)

    # (N*C, oh*ow) -> NCHW output: free reshape, no transpose.
    return out.reshape(N, C, oh, ow)


# ---------------------------------------------------------------------------
# Pure-JAX reference (same window rule as torch AdaptiveAvgPool2d)
# ---------------------------------------------------------------------------
def _reference_adaptive_avg_pool2d(x_nchw, output_size):
    N, C, H, W = x_nchw.shape
    oh = ow = int(output_size)
    rows = []
    for i in range(oh):
        h0, h1 = (i * H) // oh, -(-((i + 1) * H) // oh)
        cols = []
        for j in range(ow):
            w0, w1 = (j * W) // ow, -(-((j + 1) * W) // ow)
            cols.append(jnp.mean(x_nchw[:, :, h0:h1, w0:w1], axis=(2, 3)))
        rows.append(jnp.stack(cols, axis=-1))   # (N, C, ow)
    return jnp.stack(rows, axis=-2)             # (N, C, oh, ow)


if __name__ == "__main__":
    # AdaptiveAvgPool(out_channels=4, output_size=...), NCHW input.
    N, C, H, W = 2, 4, 16, 16
    key = jax.random.PRNGKey(0)
    x = jax.random.normal(key, (N, C, H, W), dtype=jnp.float32)

    # Evenly-divisible, overlapping-window, and global-pool cases (f32 path).
    for output_size in (4, 3, 1):
        out = jax.block_until_ready(adaptive_avg_pool2d(x, output_size))
        ref = _reference_adaptive_avg_pool2d(x, output_size)
        assert out.shape == (N, C, output_size, output_size), out.shape
        assert jnp.allclose(out, ref, atol=1e-4, rtol=1e-4), (
            output_size, float(jnp.max(jnp.abs(out - ref))))

    # bf16 path (single MXU pass), looser tolerance for the bf16 output cast.
    xb = x.astype(jnp.bfloat16)
    out_b = jax.block_until_ready(adaptive_avg_pool2d(xb, 4))
    ref_b = _reference_adaptive_avg_pool2d(xb.astype(jnp.float32), 4)
    assert jnp.allclose(out_b.astype(jnp.float32), ref_b, atol=2e-2, rtol=2e-2)

    print("KERNEL_OK")
</pallas_src>

<mosaic_0001>
module attributes {stable_mosaic.version = 11 : i64} {
  func.func @_adaptive_avg_pool_kernel(%arg0: i32, %arg1: memref<256x16xbf16, #tpu.memory_space<vmem>>, %arg2: memref<1x16xf32, #tpu.memory_space<vmem>>, %arg3: memref<8x256xf32, #tpu.memory_space<vmem>>, %arg4: memref<8x16xf32, #tpu.memory_space<vmem>>) attributes {dimension_semantics = [#tpu.dimension_semantics<parallel>], iteration_bounds = array<i64: 1>, scalar_prefetch = 0 : i64, scratch_operands = 0 : i64, tpu.core_type = #tpu.core_type<tc>, window_params = [{pipeline_mode = #tpu.pipeline_mode<synchronous>, transform_indices = @transform_0, window_bounds = array<i64: 256, 16>}, {pipeline_mode = #tpu.pipeline_mode<synchronous>, transform_indices = @transform_1, window_bounds = array<i64: 1, 16>}, {transform_indices = @transform_2, window_bounds = array<i64: 8, 256>}, {transform_indices = @transform_3, window_bounds = array<i64: 8, 16>}]} {
    %c0 = arith.constant 0 : index
    %c0_0 = arith.constant 0 : index
    %0 = vector.load %arg3[%c0, %c0_0] : memref<8x256xf32, #tpu.memory_space<vmem>>, vector<8x256xf32>
    %c0_1 = arith.constant 0 : index
    %c0_2 = arith.constant 0 : index
    %1 = vector.load %arg1[%c0_1, %c0_2] : memref<256x16xbf16, #tpu.memory_space<vmem>>, vector<256x16xbf16>
    %2 = arith.truncf %0 : vector<8x256xf32> to vector<8x256xbf16>
    %3 = arith.extf %2 : vector<8x256xbf16> to vector<8x256xf32>
    %4 = arith.subf %0, %3 : vector<8x256xf32>
    %5 = arith.truncf %4 : vector<8x256xf32> to vector<8x256xbf16>
    %cst = arith.constant dense<0.000000e+00> : vector<8x16xf32>
    %6 = tpu.matmul %2, %1, %cst {dimension_numbers = #tpu.dot_dimension_numbers<[1], [0], [0], [1], [0, 0, 1, 1], [], []>} : vector<8x256xbf16>, vector<256x16xbf16>, vector<8x16xf32> -> vector<8x16xf32>
    %cst_3 = arith.constant dense<0.000000e+00> : vector<8x16xf32>
    %7 = tpu.matmul %5, %1, %cst_3 {dimension_numbers = #tpu.dot_dimension_numbers<[1], [0], [0], [1], [0, 0, 1, 1], [], []>} : vector<8x256xbf16>, vector<256x16xbf16>, vector<8x16xf32> -> vector<8x16xf32>
    %8 = arith.addf %6, %7 : vector<8x16xf32>
    %c0_4 = arith.constant 0 : index
    %c0_5 = arith.constant 0 : index
    %9 = vector.load %arg2[%c0_4, %c0_5] : memref<1x16xf32, #tpu.memory_space<vmem>>, vector<1x16xf32>
    %10 = vector.broadcast %9 : vector<1x16xf32> to vector<8x16xf32>
    %11 = arith.mulf %8, %10 : vector<8x16xf32>
    %c0_6 = arith.constant 0 : index
    %c0_7 = arith.constant 0 : index
    %12 = vector.load %arg4[%c0_6, %c0_7] : memref<8x16xf32, #tpu.memory_space<vmem>>, vector<8x16xf32>
    tpu.vector_store %arg4[%c0_6, %c0_7], %11 {strides = array<i32>} : memref<8x16xf32, #tpu.memory_space<vmem>>, vector<8x16xf32>,
    return
  }
  func.func @transform_0(%arg0: i32) -> (i32, i32) {
    %c0_i32 = arith.constant 0 : i32
    %c0_i32_0 = arith.constant 0 : i32
    %c0_i32_1 = arith.constant 0 : i32
    return %c0_i32, %c0_i32_0 : i32, i32
  }
  func.func @transform_1(%arg0: i32) -> (i32, i32) {
    %c0_i32 = arith.constant 0 : i32
    %c0_i32_0 = arith.constant 0 : i32
    %c0_i32_1 = arith.constant 0 : i32
    return %c0_i32, %c0_i32_0 : i32, i32
  }
  func.func @transform_2(%arg0: i32) -> (i32, i32) {
    %c0_i32 = arith.constant 0 : i32
    %c0_i32_0 = arith.constant 0 : i32
    return %arg0, %c0_i32 : i32, i32
  }
  func.func @transform_3(%arg0: i32) -> (i32, i32) {
    %c0_i32 = arith.constant 0 : i32
    %c0_i32_0 = arith.constant 0 : i32
    return %arg0, %c0_i32 : i32, i32
  }
}

</mosaic_0001>

<llo_original>
// kernel: tpu_custom_call.1
$region0: #{tpu_custom_call.1}
  #allocation0 [shape = 'u32[]', space=smem, size = 0x4, offset = 0x4, fixed_abs, tag = 'smem constant byte address 0x4 - core index']
  #allocation1 [shape = 'u32[72,128]{1,0:T(1,128)}', space=vmem, size = 0x9000, scoped, tag = 'internal scratch']
  %s0 = inlined_call_operand.vmem [shape: bf16[256,16], index: 0, kind: input, shape index: {}]
  %s1 = inlined_call_operand.vmem [shape: f32[1,16], index: 1, kind: input, shape index: {}]
  %s2 = inlined_call_operand.vmem [shape: f32[8,256], index: 2, kind: input, shape index: {}]
  %s3 = inlined_call_operand.hbm [shape: f32[8,16], index: 3, kind: output, shape index: {}]
  %s4 = sld [smem:[#allocation0]]
  $region22: #{tpu_custom_call.1} parent=0
    _
  %s6 = ssub.s32 1, %s4
  %s7 = scalar_select 0, %s6, %s4
  $region1: #{tpu_custom_call.1} parent=0
    #allocation2 [shape = 'u8[4096]{0}', space=vmem, size = 0x1000, scoped, tag = 'output window, operand 0, single buffered']
    #allocation3 [shape = 's32[1]{0}', space=sflag, size = 0x4, scoped, tag = 'scoped memory for tpu_custom_call.1']
    %8 = vsyncpa [#allocation3], 0
    // Predicated region
    $region2: #{tpu_custom_call.1} parent=1 // pred_check
      _
    $region3: #{tpu_custom_call.1} parent=1 // pred_check_branch
      %10 = sbr.rel (0) target = $region5
    $region4: #{tpu_custom_call.1} parent=1 // pred_region
      _
    $region5: #{tpu_custom_call.1} parent=1 // pred_fallthru
      _
    // Predicated region
    $region6: #{tpu_custom_call.1} parent=1 // pred_check
      _
    $region7: #{tpu_custom_call.1} parent=1 // pred_check_branch
      %12 = sbr.rel (0) target = $region9
    $region8: #{tpu_custom_call.1} parent=1 // pred_region
      _
    $region9: #{tpu_custom_call.1} parent=1 // pred_fallthru
      _
    // Predicated region
    $region10: #{tpu_custom_call.1} parent=1 // pred_check
      _
    $region11: #{tpu_custom_call.1} parent=1 // pred_check_branch
      %14 = sbr.rel (0) target = $region13
    $region12: #{tpu_custom_call.1} parent=1 // pred_region
      _
    $region13: #{tpu_custom_call.1} parent=1 // pred_fallthru
      _
    %v15 = vld [vmem:[%s2] sm:$0xff]
    %v16 = vld [vmem:[%s2 + $0x8] sm:$0xff]
    %v17 = vld [vmem:[%s0] sm:$0xf]
    %v18 = vld [vmem:[%s0 + $0x4] sm:$0xf]
    %v19 = vld [vmem:[%s0 + $0x8] sm:$0xf]
    %v20 = vld [vmem:[%s0 + $0xc] sm:$0xf]
    %v21 = vld [vmem:[%s0 + $0x10] sm:$0xf]
    %v22 = vld [vmem:[%s0 + $0x14] sm:$0xf]
    %v23 = vld [vmem:[%s0 + $0x18] sm:$0xf]
    %v24 = vld [vmem:[%s0 + $0x1c] sm:$0xf]
    %v25 = vld [vmem:[%s0 + $0x20] sm:$0xf]
    %v26 = vld [vmem:[%s0 + $0x24] sm:$0xf]
    %v27 = vld [vmem:[%s0 + $0x28] sm:$0xf]
    %v28 = vld [vmem:[%s0 + $0x2c] sm:$0xf]
    %v29 = vld [vmem:[%s0 + $0x30] sm:$0xf]
    %v30 = vld [vmem:[%s0 + $0x34] sm:$0xf]
    %v31 = vld [vmem:[%s0 + $0x38] sm:$0xf]
    %v32 = vld [vmem:[%s0 + $0x3c] sm:$0xf]
    %v33 = vld [vmem:[%s0 + $0x40] sm:$0xf]
    %v34 = vld [vmem:[%s0 + $0x44] sm:$0xf]
    %v35 = vld [vmem:[%s0 + $0x48] sm:$0xf]
    %v36 = vld [vmem:[%s0 + $0x4c] sm:$0xf]
    %v37 = vld [vmem:[%s0 + $0x50] sm:$0xf]
    %v38 = vld [vmem:[%s0 + $0x54] sm:$0xf]
    %v39 = vld [vmem:[%s0 + $0x58] sm:$0xf]
    %v40 = vld [vmem:[%s0 + $0x5c] sm:$0xf]
    %v41 = vld [vmem:[%s0 + $0x60] sm:$0xf]
    %v42 = vld [vmem:[%s0 + $0x64] sm:$0xf]
    %v43 = vld [vmem:[%s0 + $0x68] sm:$0xf]
    %v44 = vld [vmem:[%s0 + $0x6c] sm:$0xf]
    %v45 = vld [vmem:[%s0 + $0x70] sm:$0xf]
    %v46 = vld [vmem:[%s0 + $0x74] sm:$0xf]
    %v47 = vld [vmem:[%s0 + $0x78] sm:$0xf]
    %v48 = vld [vmem:[%s0 + $0x7c] sm:$0xf]
    %v49 = vpack.c.bf16 %v16, %v15
    %v50 = vunpack.c.l.bf16 %v49
    %v51 = vunpack.c.h.bf16 %v49
    %v52 = vsub.f32 %v15, %v50
    %v53 = vsub.f32 %v16, %v51
    %v54 = vpack.c.bf16 %v52, %v52
    %v55 = vpack.c.bf16 %v53, %v53
    %v88 = vunpack.c.l.b16 %v17
    %v89 = vunpack.c.l.b16 %v18
    %v90 = vunpack.c.l.b16 %v19
    %v91 = vunpack.c.l.b16 %v20
    %v92 = vunpack.c.l.b16 %v21
    %v93 = vunpack.c.l.b16 %v22
    %v94 = vunpack.c.l.b16 %v23
    %v95 = vunpack.c.l.b16 %v24
    %v96 = vunpack.c.l.b16 %v25
    %v97 = vunpack.c.l.b16 %v26
    %v98 = vunpack.c.l.b16 %v27
    %v99 = vunpack.c.l.b16 %v28
    %v100 = vunpack.c.l.b16 %v29
    %v101 = vunpack.c.l.b16 %v30
    %v102 = vunpack.c.l.b16 %v31
    %v103 = vunpack.c.l.b16 %v32
    %v104 = vunpack.c.l.b16 %v33
    %v105 = vunpack.c.l.b16 %v34
    %v106 = vunpack.c.l.b16 %v35
    %v107 = vunpack.c.l.b16 %v36
    %v108 = vunpack.c.l.b16 %v37
    %v109 = vunpack.c.l.b16 %v38
    %v110 = vunpack.c.l.b16 %v39
    %v111 = vunpack.c.l.b16 %v40
    %v112 = vunpack.c.l.b16 %v41
    %v113 = vunpack.c.l.b16 %v42
    %v114 = vunpack.c.l.b16 %v43
    %v115 = vunpack.c.l.b16 %v44
    %v116 = vunpack.c.l.b16 %v45
    %v117 = vunpack.c.l.b16 %v46
    %v118 = vunpack.c.l.b16 %v47
    %v119 = vunpack.c.l.b16 %v48
    %v120 = vpack.c.b16 %v89, %v88
    %v121 = vpack.c.b16 %v91, %v90
    %v122 = vpack.c.b16 %v93, %v92
    %v123 = vpack.c.b16 %v95, %v94
    %v124 = vpack.c.b16 %v97, %v96
    %v125 = vpack.c.b16 %v99, %v98
    %v126 = vpack.c.b16 %v101, %v100
    %v127 = vpack.c.b16 %v103, %v102
    %v128 = vpack.c.b16 %v105, %v104
    %v129 = vpack.c.b16 %v107, %v106
    %v130 = vpack.c.b16 %v109, %v108
    %v131 = vpack.c.b16 %v111, %v110
    %v132 = vpack.c.b16 %v113, %v112
    %v133 = vpack.c.b16 %v115, %v114
    %v134 = vpack.c.b16 %v117, %v116
    %v135 = vpack.c.b16 %v119, %v118
    %152 = vmatpush.bf16.msra.mxu0 %v127
    %153 = vmatpush.bf16.msra.mxu0 %v126
    %154 = vmatpush.bf16.msra.mxu0 %v125
    %155 = vmatpush.bf16.msra.mxu0 %v124
    %156 = vmatpush.bf16.msra.mxu0 %v123
    %157 = vmatpush.bf16.msra.mxu0 %v122
    %158 = vmatpush.bf16.msra.mxu0 %v121
    %159 = vmatpush.bf16.msra.mxu0 %v120
    %160 = vmatmul.bf16.gmra.mxu0 %v54
    %v161 = vpop.f32.mrf.mxu0
    %v162 = vadd.f32 0.0, %v161
    %v163 = vpop.f32.mrf.mxu0
    %164 = vdwg.mxu0
    %165 = vmatpush.bf16.msra.mxu0 %v135
    %166 = vmatpush.bf16.msra.mxu0 %v134
    %167 = vmatpush.bf16.msra.mxu0 %v133
    %168 = vmatpush.bf16.msra.mxu0 %v132
    %169 = vmatpush.bf16.msra.mxu0 %v131
    %170 = vmatpush.bf16.msra.mxu0 %v130
    %171 = vmatpush.bf16.msra.mxu0 %v129
    %172 = vmatpush.bf16.msra.mxu0 %v128
    %173 = vmatmul.bf16.gmra.mxu0 %v55
    %v174 = vpop.f32.mrf.mxu0
    %v175 = vadd.f32 %v162, %v174
    %v176 = vpop.f32.mrf.mxu0
    %177 = vdwg.mxu0
    %v179 = vunpack.c.l.b16 %v49
    %v180 = vunpack.c.h.b16 %v49
    %v181 = vpack.c.b16 %v179, %v179
    %v182 = vpack.c.b16 %v180, %v180
    %185 = vmatpush.bf16.msra.mxu0 %v127
    %186 = vmatpush.bf16.msra.mxu0 %v126
    %187 = vmatpush.bf16.msra.mxu0 %v125
    %188 = vmatpush.bf16.msra.mxu0 %v124
    %189 = vmatpush.bf16.msra.mxu0 %v123
    %190 = vmatpush.bf16.msra.mxu0 %v122
    %191 = vmatpush.bf16.msra.mxu0 %v121
    %192 = vmatpush.bf16.msra.mxu0 %v120
    %193 = vmatmul.bf16.gmra.mxu0 %v181
    %v194 = vpop.f32.mrf.mxu0
    %v195 = vadd.f32 %v175, %v194
    %v196 = vpop.f32.mrf.mxu0
    %197 = vdwg.mxu0
    %198 = vmatpush.bf16.msra.mxu0 %v135
    %199 = vmatpush.bf16.msra.mxu0 %v134
    %200 = vmatpush.bf16.msra.mxu0 %v133
    %201 = vmatpush.bf16.msra.mxu0 %v132
    %202 = vmatpush.bf16.msra.mxu0 %v131
    %203 = vmatpush.bf16.msra.mxu0 %v130
    %204 = vmatpush.bf16.msra.mxu0 %v129
    %205 = vmatpush.bf16.msra.mxu0 %v128
    %206 = vmatmul.bf16.gmra.mxu0 %v182
    %v207 = vpop.f32.mrf.mxu0
    %v208 = vadd.f32 %v195, %v207
    %v209 = vpop.f32.mrf.mxu0
    %210 = vdwg.mxu0
    %v211 = vld [vmem:[%s1] sm:$0x1]
    %v213 = vperm.slane %v211, 0
    %v215 = vmul.f32 %v208, %v213
    %vm216 = vcmask 130048
    %217 = vst.msk [vmem:[#allocation2] sm:$0xff] %vm216, %v215
    // Predicated region
    $region14: #{tpu_custom_call.1} parent=1 // pred_check
      _
    $region15: #{tpu_custom_call.1} parent=1 // pred_check_branch
      %219 = sbr.rel (0) target = $region17
    $region16: #{tpu_custom_call.1} parent=1 // pred_region
      %221 = vsyncadd [#allocation3], 0
      %s223 = sshll.u32 [#allocation2], 4
      %s224 = int_to_ptr.vmem [resolvable:$true] %s223
      %s225 = sshll.u32 %s3, 4
      %s226 = int_to_ptr.hbm [resolvable:$true] %s225
      %228 = dma.vmem_to_hbm [thread:$0]  %s224, 128, %s226, [#allocation3]
    $region17: #{tpu_custom_call.1} parent=1 // pred_fallthru
      _
    // Predicated region
    $region18: #{tpu_custom_call.1} parent=1 // pred_check
      _
    $region19: #{tpu_custom_call.1} parent=1 // pred_check_branch
      %230 = sbr.rel (0) target = $region21
    $region20: #{tpu_custom_call.1} parent=1 // pred_region
      %232 = dma.done [#allocation3], 128
    $region21: #{tpu_custom_call.1} parent=1 // pred_fallthru
      _
    %233 = vsyncpa [#allocation3], 1

</llo_original>
